<compile_context>
chip_gen: v7x
topology: tpu7x:2x2x1
jax: 0.10.0
libtpu: 0.0.40
codegen_flags: <defaults>
</compile_context>

<pallas_src>
import jax
import jax.numpy as jnp
from jax import lax
from jax.experimental import pallas as pl
from jax.experimental.pallas import tpu as pltpu


def _round_up(x: int, n: int) -> int:
    return ((x + n - 1) // n) * n


def _default_tiles() -> tuple[int, int]:
    """Generation-aware default block size (rows, cols)."""
    try:
        kind = jax.devices()[0].device_kind.lower()
    except Exception:  # pragma: no cover - defensive
        kind = ""
    if ("v6" in kind) or ("v7" in kind) or ("7x" in kind):
        # Faster HBM -> bigger blocks to amortize per-step overhead.
        # 512x2048 f32 = 4 MiB/block; in+out double-buffered = 16 MiB,
        # inside the 32 MiB scoped VMEM default on v6e/v7x.
        return 512, 2048
    # v5e / unknown: stay conservative (16 MiB scoped VMEM default).
    return 256, 2048


def _make_arcface_kernel(s: float, m: float):
    import math
    s = float(s)
    s_cos_m = s * math.cos(float(m))
    s_sin_m = s * math.sin(float(m))

    def arcface_kernel(cos_ref, label_ref, out_ref):
        x = cos_ref[...].astype(jnp.float32)          # (TB, TC)
        tile_c = x.shape[1]
        # Shift the (TB, 1) label into this class tile's local frame instead
        # of offsetting the full-tile iota (per-row int op vs per-element).
        lab_local = label_ref[...] - pl.program_id(1) * tile_c   # (TB, 1) i32
        col = lax.broadcasted_iota(jnp.int32, x.shape, 1)
        # col >= 0 always, so label == -1 rows can never match; no extra
        # (lab != -1) compare is needed.
        is_target = col == lab_local
        # sin(acos(x)) = sqrt(1 - x^2); clamp keeps boundary-block garbage
        # (and |x| slightly > 1) finite instead of NaN.
        sin_theta = jnp.sqrt(jnp.maximum(1.0 - x * x, 0.0))
        out = jnp.where(is_target, x * s_cos_m - sin_theta * s_sin_m, x * s)
        out_ref[...] = out.astype(out_ref.dtype)

    return arcface_kernel


def arcface_forward(cosine: jax.Array, label: jax.Array,
                    s: float = 64.0, m: float = 0.5,
                    tile_b: int | None = None, tile_c: int | None = None,
                    vmem_limit_bytes: int | None = None,
                    donate_cosine: bool = False) -> jax.Array:
    """Pallas ArcFace forward.

    cosine: (B, C) float array (any float dtype; kept as I/O dtype).
    label:  (B,)  integer array; -1 means "no margin for this row".
    """
    B, C = cosine.shape
    label2d = label.reshape(B, 1).astype(jnp.int32)

    itemsize = jnp.dtype(cosine.dtype).itemsize
    # Sublane packing: 8 rows for 4-byte, 16 for 2-byte, 32 for 1-byte dtypes.
    sublane = max(8, 32 // max(itemsize, 1))

    def_tb, def_tc = _default_tiles()
    if tile_b is None:
        tile_b = def_tb
    C_aligned = _round_up(C, 128)
    if tile_c is None:
        # Moderate C: one class tile per row tile -> contiguous DMA, 1-D grid.
        tile_c = C_aligned if C_aligned <= 8192 else def_tc

    tile_b_eff = _round_up(min(int(tile_b), _round_up(B, sublane)), sublane)
    tile_c_eff = _round_up(min(int(tile_c), C_aligned), 128)

    grid = (pl.cdiv(B, tile_b_eff), pl.cdiv(C, tile_c_eff))

    kernel = _make_arcface_kernel(s, m)

    compiler_kwargs = dict(dimension_semantics=("parallel", "parallel"))
    if vmem_limit_bytes is not None:
        compiler_kwargs["vmem_limit_bytes"] = int(vmem_limit_bytes)

    out = pl.pallas_call(
        kernel,
        out_shape=jax.ShapeDtypeStruct((B, C), cosine.dtype),
        grid_spec=pltpu.PrefetchScalarGridSpec(
            num_scalar_prefetch=0,
            grid=grid,
            in_specs=[
                pl.BlockSpec((tile_b_eff, tile_c_eff), lambda i, j: (i, j)),
                # Label block depends only on the row tile.
                pl.BlockSpec((tile_b_eff, 1), lambda i, j: (i, 0)),
            ],
            out_specs=pl.BlockSpec((tile_b_eff, tile_c_eff),
                                   lambda i, j: (i, j)),
        ),
        compiler_params=pltpu.CompilerParams(**compiler_kwargs),
        # Only alias when the caller actually donates cosine; a non-donated
        # alias forces XLA to insert a defensive full copy (extra HBM pass).
        input_output_aliases=({0: 0} if donate_cosine else {}),
    )(cosine, label2d)

    return out


if __name__ == "__main__":
    key = jax.random.PRNGKey(0)
    k1, k2, k3, k4, k5, k6 = jax.random.split(key, 6)
    s, m = 64.0, 0.5

    def ref_arcface(cosine, label):
        # Pure-JAX reference mirroring the PyTorch math.
        x = cosine.astype(jnp.float32)
        theta = jnp.arccos(x)
        C = x.shape[1]
        onehot = ((jnp.arange(C)[None, :] == label[:, None])
                  & (label[:, None] != -1))
        return jnp.cos(theta + m * onehot.astype(jnp.float32)) * s

    # Case 1: lane/sublane-aligned f32 shape (single grid step).
    B, C = 8, 128
    cosine = jax.random.uniform(k1, (B, C), jnp.float32, minval=-0.99, maxval=0.99)
    label = jax.random.randint(k2, (B,), 0, C, dtype=jnp.int32).at[3].set(-1)
    out = jax.block_until_ready(arcface_forward(cosine, label, s=s, m=m))
    assert out.shape == (B, C) and out.dtype == cosine.dtype
    assert jnp.allclose(out, ref_arcface(cosine, label), atol=1e-3, rtol=1e-3)

    # Case 2: ragged shape exercising cdiv-grid boundary masking in both axes
    # and the per-class-tile label offset (tile_c=128 -> two class tiles).
    B2, C2 = 6, 200
    cosine2 = jax.random.uniform(k3, (B2, C2), jnp.float32, minval=-0.99, maxval=0.99)
    label2 = jax.random.randint(k4, (B2,), 0, C2, dtype=jnp.int32).at[0].set(-1)
    out2 = jax.block_until_ready(
        arcface_forward(cosine2, label2, s=s, m=m, tile_b=8, tile_c=128))
    assert out2.shape == (B2, C2)
    assert jnp.allclose(out2, ref_arcface(cosine2, label2), atol=1e-3, rtol=1e-3)

    # Case 3: bf16 I/O (half the HBM traffic), ragged batch, auto tiles.
    B3, C3 = 10, 384
    cosine3 = jax.random.uniform(k5, (B3, C3), jnp.float32,
                                 minval=-0.99, maxval=0.99).astype(jnp.bfloat16)
    label3 = jax.random.randint(k6, (B3,), 0, C3, dtype=jnp.int32).at[2].set(-1)
    out3 = jax.block_until_ready(arcface_forward(cosine3, label3, s=s, m=m))
    assert out3.shape == (B3, C3) and out3.dtype == jnp.bfloat16
    ref3 = ref_arcface(cosine3, label3)
    assert jnp.allclose(out3.astype(jnp.float32), ref3, atol=1.0, rtol=2e-2)

    print("KERNEL_OK")
</pallas_src>

<mosaic_0001>
module attributes {stable_mosaic.version = 11 : i64} {
  func.func @arcface_kernel(%arg0: i32, %arg1: i32, %arg2: memref<8x128xf32, #tpu.memory_space<vmem>>, %arg3: memref<8x1xi32, #tpu.memory_space<vmem>>, %arg4: memref<8x128xf32, #tpu.memory_space<vmem>>) attributes {dimension_semantics = [#tpu.dimension_semantics<parallel>, #tpu.dimension_semantics<parallel>], iteration_bounds = array<i64: 1, 1>, scalar_prefetch = 0 : i64, scratch_operands = 0 : i64, tpu.core_type = #tpu.core_type<tc>, window_params = [{transform_indices = @transform_0, window_bounds = array<i64: 8, 128>}, {transform_indices = @transform_1, window_bounds = array<i64: 8, 1>}, {transform_indices = @transform_2, window_bounds = array<i64: 8, 128>}]} {
    %c0 = arith.constant 0 : index
    %c0_0 = arith.constant 0 : index
    %0 = vector.load %arg2[%c0, %c0_0] : memref<8x128xf32, #tpu.memory_space<vmem>>, vector<8x128xf32>
    %c0_1 = arith.constant 0 : index
    %c0_2 = arith.constant 0 : index
    %1 = vector.load %arg3[%c0_1, %c0_2] : memref<8x1xi32, #tpu.memory_space<vmem>>, vector<8x1xi32>
    %c128_i32 = arith.constant 128 : i32
    %2 = arith.muli %arg1, %c128_i32 : i32
    %3 = vector.broadcast %2 : i32 to vector<8x1xi32>
    %4 = arith.subi %1, %3 : vector<8x1xi32>
    %5 = tpu.iota {dimensions = array<i32: 1>} : vector<8x128xi32>
    %6 = vector.broadcast %4 : vector<8x1xi32> to vector<8x128xi32>
    %7 = arith.cmpi eq, %5, %6 : vector<8x128xi32>
    %8 = arith.mulf %0, %0 : vector<8x128xf32>
    %cst = arith.constant 1.000000e+00 : f32
    %9 = vector.broadcast %cst : f32 to vector<8x128xf32>
    %10 = arith.subf %9, %8 : vector<8x128xf32>
    %cst_3 = arith.constant 0.000000e+00 : f32
    %11 = vector.broadcast %cst_3 : f32 to vector<8x128xf32>
    %12 = arith.maximumf %10, %11 : vector<8x128xf32>
    %13 = math.sqrt %12 : vector<8x128xf32>
    %cst_4 = arith.constant 56.1652832 : f32
    %14 = vector.broadcast %cst_4 : f32 to vector<8x128xf32>
    %15 = arith.mulf %0, %14 : vector<8x128xf32>
    %cst_5 = arith.constant 30.6832352 : f32
    %16 = vector.broadcast %cst_5 : f32 to vector<8x128xf32>
    %17 = arith.mulf %13, %16 : vector<8x128xf32>
    %18 = arith.subf %15, %17 : vector<8x128xf32>
    %cst_6 = arith.constant 6.400000e+01 : f32
    %19 = vector.broadcast %cst_6 : f32 to vector<8x128xf32>
    %20 = arith.mulf %0, %19 : vector<8x128xf32>
    %21 = arith.select %7, %18, %20 : vector<8x128xi1>, vector<8x128xf32>
    %c0_7 = arith.constant 0 : index
    %c0_8 = arith.constant 0 : index
    %22 = vector.load %arg4[%c0_7, %c0_8] : memref<8x128xf32, #tpu.memory_space<vmem>>, vector<8x128xf32>
    tpu.vector_store %arg4[%c0_7, %c0_8], %21 {strides = array<i32>} : memref<8x128xf32, #tpu.memory_space<vmem>>, vector<8x128xf32>,
    return
  }
  func.func @transform_0(%arg0: i32, %arg1: i32) -> (i32, i32) {
    %c0_i32 = arith.constant 0 : i32
    return %arg0, %arg1 : i32, i32
  }
  func.func @transform_1(%arg0: i32, %arg1: i32) -> (i32, i32) {
    %c0_i32 = arith.constant 0 : i32
    %c0_i32_0 = arith.constant 0 : i32
    return %arg0, %c0_i32 : i32, i32
  }
  func.func @transform_2(%arg0: i32, %arg1: i32) -> (i32, i32) {
    %c0_i32 = arith.constant 0 : i32
    return %arg0, %arg1 : i32, i32
  }
}

</mosaic_0001>

<llo_original>
// kernel: tpu_custom_call.1
$region0: #{tpu_custom_call.1}
  #allocation0 [shape = 'u32[]', space=smem, size = 0x4, offset = 0x4, fixed_abs, tag = 'smem constant byte address 0x4 - core index']
  #allocation1 [shape = 'u32[144,128]{1,0:T(1,128)}', space=vmem, size = 0x12000, scoped, tag = 'internal scratch']
  %s0 = inlined_call_operand.vmem [shape: f32[8,128], index: 0, kind: input, shape index: {}]
  %s1 = inlined_call_operand.vmem [shape: s32[8,1], index: 1, kind: input, shape index: {}]
  %s2 = inlined_call_operand.hbm [shape: f32[8,128], index: 2, kind: output, shape index: {}]
  %s3 = sld [smem:[#allocation0]]
  $region18: #{tpu_custom_call.1} parent=0
    _
  %s5 = ssub.s32 1, %s3
  %s6 = scalar_select 0, %s5, %s3
  $region1: #{tpu_custom_call.1} parent=0
    #allocation2 [shape = 'u8[4096]{0}', space=vmem, size = 0x1000, scoped, tag = 'output window, operand 0, single buffered']
    #allocation3 [shape = 's32[1]{0}', space=sflag, size = 0x4, scoped, tag = 'scoped memory for tpu_custom_call.1']
    %7 = vsyncpa [#allocation3], 0
    // Predicated region
    $region2: #{tpu_custom_call.1} parent=1 // pred_check
      _
    $region3: #{tpu_custom_call.1} parent=1 // pred_check_branch
      %9 = sbr.rel (0) target = $region5
    $region4: #{tpu_custom_call.1} parent=1 // pred_region
      _
    $region5: #{tpu_custom_call.1} parent=1 // pred_fallthru
      _
    // Predicated region
    $region6: #{tpu_custom_call.1} parent=1 // pred_check
      _
    $region7: #{tpu_custom_call.1} parent=1 // pred_check_branch
      %11 = sbr.rel (0) target = $region9
    $region8: #{tpu_custom_call.1} parent=1 // pred_region
      _
    $region9: #{tpu_custom_call.1} parent=1 // pred_fallthru
      _
    %v12 = vld [vmem:[%s0] sm:$0xff]
    %v13 = vld [vmem:[%s1] sm:$0xff]
    %s14 = smul.u32 0, 128
    %v15 = vstv %s14
    %v16 = vsub.s32 %v13, %v15
    %v17 = vlaneseq
    %v18 = vand.u32 %v17, 127
    %19 = vset.pattern.permute.xlu0 0
    %20 = vperm.xlu0 %19, %v16
    %v21 = vpop.permute.xlu0 %20
    %vm22 = vcmp.eq.s32.totalorder %v18, %v21
    %v23 = vmul.f32 %v12, %v12
    %v24 = vsub.f32 1.0, %v23
    %v25 = vmax.f32 %v24, 0.0
    %v26 = vrsqrt.pop %v25
    %v27 = vmul.f32 %v25, %v26
    %vm28 = vcmp.eq.f32.partialorder %v25, inf
    %v29 = vsel %vm28, %v25, %v27
    %vm30 = vcmp.eq.f32.partialorder %v25, 0.0
    %v31 = vand.u32 %v25, 2147483648
    %v32 = vsel %vm30, %v31, %v29
    %v33 = vmul.f32 %v12, 56.165283
    %v34 = vmul.f32 %v32, 30.683235
    %v35 = vsub.f32 %v33, %v34
    %v36 = vmul.f32 %v12, 64.0
    %v37 = vsel %vm22, %v35, %v36
    %38 = vst [vmem:[#allocation2] sm:$0xff] %v37
    // Predicated region
    $region10: #{tpu_custom_call.1} parent=1 // pred_check
      _
    $region11: #{tpu_custom_call.1} parent=1 // pred_check_branch
      %40 = sbr.rel (0) target = $region13
    $region12: #{tpu_custom_call.1} parent=1 // pred_region
      %s42 = ssub.s32 128, 128
      %43 = vsyncadd [#allocation3], %s42
      %s45 = sshll.u32 [#allocation2], 4
      %s46 = int_to_ptr.vmem [resolvable:$true] %s45
      %48 = dma.vmem_to_hbm [thread:$0]  %s46, 128, %s2, [#allocation3]
    $region13: #{tpu_custom_call.1} parent=1 // pred_fallthru
      _
    // Predicated region
    $region14: #{tpu_custom_call.1} parent=1 // pred_check
      _
    $region15: #{tpu_custom_call.1} parent=1 // pred_check_branch
      %50 = sbr.rel (0) target = $region17
    $region16: #{tpu_custom_call.1} parent=1 // pred_region
      %51 = dma.done [#allocation3], 128
    $region17: #{tpu_custom_call.1} parent=1 // pred_fallthru
      _
    %52 = vsyncpa [#allocation3], 1

</llo_original>
